<compile_context>
chip_gen: v7x
topology: tpu7x:2x2x1
jax: 0.10.0
libtpu: 0.0.40
codegen_flags: <defaults>
</compile_context>

<pallas_src>
import jax
import jax.numpy as jnp
from jax.experimental import pallas as pl
from jax.experimental.pallas import tpu as pltpu

# ---------------- configuration (small shapes) ----------------
BATCH  = 2
C_IN   = 4
H_IMG  = 16
W_IMG  = 16
PATCH  = 4
N_TOK  = (H_IMG // PATCH) * (W_IMG // PATCH)   # 16 tokens
P_DIM  = C_IN * PATCH * PATCH                  # 64 patch features
D_HID  = 32                                    # hidden width
N_CLS  = 4                                     # detection classes
N_HEAD = N_CLS + 4                             # fused class|box head width
TOP_K  = 8                                     # postprocessor top-k
M_ROWS = BATCH * N_TOK                         # batch folded into M dim = 32

# ---------------- packed parameter slab layout (rows 8-aligned, lane 0) -----
SLAB_LANES = 128
R_W1, R_W2, R_W2U, R_V, R_WH = 0, 64, 96, 128, 160
R_B1, R_B2, R_BT2, R_BH = 192, 200, 208, 216
SLAB_ROWS = 224                                # 224*128*4B = 112 KiB in VMEM


def _matmul_dtype():
    # bf16 operands (f32 accumulate) cut MXU passes ~3x on v6e/v7x; keep f32
    # on v5-class chips where bf16 VPU casts are not free.
    try:
        kind = jax.devices()[0].device_kind.lower()
    except Exception:
        return jnp.float32
    if "v2" in kind or "v3" in kind or "v4" in kind or "v5" in kind:
        return jnp.float32
    return jnp.bfloat16


MATMUL_DTYPE = _matmul_dtype()


# ---------------- single fused kernel ----------------
def fused_kernel(mask_ref,      # SMEM (BATCH,) f32 is_new_frame
                 x_ref,         # VMEM (M, P_DIM) patch features
                 slab_ref,      # VMEM (SLAB_ROWS, 128) packed parameters
                 mem_ref,       # VMEM (M, D_HID) recurrent memory
                 heads_ref,     # out: (M, N_HEAD) sigmoid(class|box)
                 newmem_ref):   # out: (M, D_HID), aliases mem_ref

    def mm(a, b):  # MXU matmul, f32 accumulate
        return jnp.dot(a.astype(MATMUL_DTYPE), b.astype(MATMUL_DTYPE),
                       preferred_element_type=jnp.float32)

    # static views into the single packed parameter slab (one DMA for all)
    w1  = slab_ref[R_W1:R_W1 + P_DIM, 0:D_HID]            # (64, 32)
    w2  = slab_ref[R_W2:R_W2 + D_HID, 0:D_HID]            # (32, 32)
    w2u = slab_ref[R_W2U:R_W2U + D_HID, 0:D_HID]          # (32, 32) = w2 @ u
    v   = slab_ref[R_V:R_V + D_HID, 0:D_HID]              # (32, 32)
    wh  = slab_ref[R_WH:R_WH + D_HID, 0:N_HEAD]           # (32, 8) = [wc | wb]
    b1  = slab_ref[R_B1:R_B1 + 1, 0:D_HID]                # (1, 32)
    b2  = slab_ref[R_B2:R_B2 + 1, 0:D_HID]                # (1, 32)
    bt2 = slab_ref[R_BT2:R_BT2 + 1, 0:D_HID]              # bt + b2 @ u
    bh  = slab_ref[R_BH:R_BH + 1, 0:N_HEAD]               # (1, 8)

    # --- backbone + encoder: patch-embed matmul + ReLU ----------------------
    h = jnp.maximum(mm(x_ref[...], w1) + b1, 0.0)          # (M, 32)

    # --- tempenc.reset_mem_by_mask: zero memory rows of new-frame batches ---
    # per-batch static row slices (16 rows = 2 sublane tiles) scaled by the
    # SMEM mask scalar; no iota / compare chain on the entry critical path.
    mem = jnp.concatenate(
        [mem_ref[b * N_TOK:(b + 1) * N_TOK, :] * (1.0 - mask_ref[b])
         for b in range(BATCH)], axis=0)                    # (M, 32)

    # --- tempenc: gated tanh recurrence + residual temporal feature ---------
    # enc @ u + bt == h @ (w2 @ u) + (bt + b2 @ u): the u-path is prefused so
    # the three matmuls below are mutually independent (MXU depth = 2 total).
    enc = mm(h, w2) + b2                                    # (M, 32)
    new_mem = jnp.tanh(mm(h, w2u) + mm(mem, v) + bt2)       # (M, 32)
    newmem_ref[...] = new_mem
    fp = enc + new_mem

    # --- decoder heads: fused class|box matmul + sigmoid --------------------
    # cxcywh->xyxy + frame-size scaling is elementwise in the JAX wrapper.
    heads_ref[...] = jax.nn.sigmoid(mm(fp, wh) + bh)        # (M, 8)


def fused_forward(mask, x_patches, slab, mem_flat):
    m = x_patches.shape[0]
    vmem = pl.BlockSpec(memory_space=pltpu.MemorySpace.VMEM)
    smem = pl.BlockSpec(memory_space=pltpu.MemorySpace.SMEM)
    return pl.pallas_call(
        fused_kernel,
        out_shape=(
            jax.ShapeDtypeStruct((m, N_HEAD), jnp.float32),   # scores|boxes
            jax.ShapeDtypeStruct((m, D_HID), jnp.float32),    # new memory
        ),
        in_specs=[smem, vmem, vmem, vmem],
        out_specs=(vmem, vmem),
        # recurrent memory updated in place: input 3 (mem_flat) -> output 1
        input_output_aliases={3: 1},
    )(mask, x_patches, slab, mem_flat)


# ---------------- plain-JAX glue ----------------
def _patchify(frame):
    # frame: NCHW -> NHWC -> (B, N_TOK, P_DIM)
    # TODO(synk): could use allow_input_fusion to fold this transpose chain
    # into the kernel's input DMA; left to XLA for portability.
    B = frame.shape[0]
    x = jnp.transpose(frame, (0, 2, 3, 1))
    x = x.reshape(B, H_IMG // PATCH, PATCH, W_IMG // PATCH, PATCH, C_IN)
    x = jnp.transpose(x, (0, 1, 3, 2, 4, 5)).reshape(B, N_TOK, P_DIM)
    return x


def pack_params(params):
    """One-time parameter prep (hoisted out of the per-frame step): fuse the
    class/box heads, prefuse the u-path (w2u, bt2), and pack everything into a
    single (SLAB_ROWS, 128) f32 slab so the kernel does one parameter DMA."""
    w2u = params["w2"] @ params["u"]
    bt2 = params["bt"] + params["b2"] @ params["u"]
    wh = jnp.concatenate([params["wc"], params["wb"]], axis=1)    # (32, 8)
    bh = jnp.concatenate([params["bc"], params["bb"]], axis=1)    # (1, 8)

    slab = jnp.zeros((SLAB_ROWS, SLAB_LANES), jnp.float32)
    for row, arr in ((R_W1, params["w1"]), (R_W2, params["w2"]),
                     (R_W2U, w2u), (R_V, params["v"]), (R_WH, wh),
                     (R_B1, params["b1"]), (R_B2, params["b2"]),
                     (R_BT2, bt2), (R_BH, bh)):
        slab = slab.at[row:row + arr.shape[0], 0:arr.shape[1]].set(arr)
    return slab


def _topk_postproc(scores, boxes):
    # RT-DETR deploy postprocessor: flatten (query, class) scores, top-k,
    # labels = idx % C, boxes gathered with idx // C.
    B, N, C = scores.shape
    flat = scores.reshape(B, N * C)
    top_scores, top_idx = jax.lax.top_k(flat, TOP_K)
    labels = top_idx % C
    box_idx = top_idx // C
    top_boxes = jnp.take_along_axis(boxes, box_idx[..., None], axis=1)
    return labels, top_boxes, top_scores


def torch_model_postproc_forward(slab, frame, is_new_frame, *memory):
    """Mirrors TorchModelPostproc.forward.

    memory_spec is a single tensor ("memory",), so flatten/unflatten_memory
    are identity plumbing (pure-Python glue in the original module).
    Returns (labels, boxes, scores, memory_out).
    """
    B = frame.shape[0]
    x_patches = _patchify(frame).reshape(B * N_TOK, P_DIM)

    (mem,) = memory
    mem_flat = mem.reshape(B * N_TOK, D_HID)
    mask = is_new_frame.astype(jnp.float32)                 # (B,) -> SMEM

    heads, new_mem_flat = fused_forward(mask, x_patches, slab, mem_flat)

    heads = heads.reshape(B, N_TOK, N_HEAD)
    scores = heads[..., :N_CLS]                    # sigmoid class scores
    cx = heads[..., N_CLS + 0]
    cy = heads[..., N_CLS + 1]
    bw = heads[..., N_CLS + 2]
    bhh = heads[..., N_CLS + 3]
    # cxcywh -> xyxy scaled by [W, H, W, H] (elementwise, replaces old t8)
    boxes = jnp.stack(
        [(cx - 0.5 * bw) * W_IMG, (cy - 0.5 * bhh) * H_IMG,
         (cx + 0.5 * bw) * W_IMG, (cy + 0.5 * bhh) * H_IMG], axis=-1)

    labels, top_boxes, top_scores = _topk_postproc(scores, boxes)
    new_mem = new_mem_flat.reshape(B, N_TOK, D_HID)
    return labels, top_boxes, top_scores, new_mem


def init_params(key):
    ks = jax.random.split(key, 10)

    def lin(k, fan_in, shape):
        return jax.random.normal(k, shape, jnp.float32) / jnp.sqrt(fan_in)

    return {
        "w1": lin(ks[0], P_DIM, (P_DIM, D_HID)),
        "b1": jnp.zeros((1, D_HID), jnp.float32),
        "w2": lin(ks[1], D_HID, (D_HID, D_HID)),
        "b2": jnp.zeros((1, D_HID), jnp.float32),
        "u":  lin(ks[2], D_HID, (D_HID, D_HID)),
        "v":  lin(ks[3], D_HID, (D_HID, D_HID)),
        "bt": jnp.zeros((1, D_HID), jnp.float32),
        "wc": lin(ks[4], D_HID, (D_HID, N_CLS)),
        "bc": jnp.zeros((1, N_CLS), jnp.float32),
        "wb": lin(ks[5], D_HID, (D_HID, 4)),
        "bb": jnp.zeros((1, 4), jnp.float32),
    }


if __name__ == "__main__":
    key = jax.random.PRNGKey(0)
    k_frame, k_mem = jax.random.split(key, 2)

    frame = jax.random.normal(k_frame, (BATCH, C_IN, H_IMG, W_IMG), jnp.float32)
    is_new_frame = jnp.array([True, False])
    memory0 = jax.random.normal(k_mem, (BATCH, N_TOK, D_HID), jnp.float32)
    params = init_params(jax.random.PRNGKey(42))

    slab = pack_params(params)        # hoisted out of the per-frame jit step

    fwd = jax.jit(torch_model_postproc_forward)
    labels, boxes, scores, mem_out = fwd(slab, frame, is_new_frame, memory0)
    jax.block_until_ready((labels, boxes, scores, mem_out))

    assert labels.shape == (BATCH, TOP_K)
    assert boxes.shape == (BATCH, TOP_K, 4)
    assert scores.shape == (BATCH, TOP_K)
    assert mem_out.shape == (BATCH, N_TOK, D_HID)
    print("KERNEL_OK")
</pallas_src>

<mosaic_0001>
module attributes {stable_mosaic.version = 11 : i64} {
  func.func @fused_kernel(%arg0: memref<2xf32, #tpu.memory_space<smem>>, %arg1: memref<32x64xf32, #tpu.memory_space<vmem>>, %arg2: memref<224x128xf32, #tpu.memory_space<vmem>>, %arg3: memref<32x32xf32, #tpu.memory_space<vmem>>, %arg4: memref<32x8xf32, #tpu.memory_space<vmem>>, %arg5: memref<32x32xf32, #tpu.memory_space<vmem>>) attributes {dimension_semantics = [], scalar_prefetch = 0 : i64, scratch_operands = 0 : i64, tpu.core_type = #tpu.core_type<tc>} {
    %c0 = arith.constant 0 : index
    %c0_0 = arith.constant 0 : index
    %0 = vector.load %arg2[%c0, %c0_0] : memref<224x128xf32, #tpu.memory_space<vmem>>, vector<64x32xf32>
    %c64 = arith.constant 64 : index
    %c0_1 = arith.constant 0 : index
    %1 = vector.load %arg2[%c64, %c0_1] : memref<224x128xf32, #tpu.memory_space<vmem>>, vector<32x32xf32>
    %c96 = arith.constant 96 : index
    %c0_2 = arith.constant 0 : index
    %2 = vector.load %arg2[%c96, %c0_2] : memref<224x128xf32, #tpu.memory_space<vmem>>, vector<32x32xf32>
    %c128 = arith.constant 128 : index
    %c0_3 = arith.constant 0 : index
    %3 = vector.load %arg2[%c128, %c0_3] : memref<224x128xf32, #tpu.memory_space<vmem>>, vector<32x32xf32>
    %c160 = arith.constant 160 : index
    %c0_4 = arith.constant 0 : index
    %4 = vector.load %arg2[%c160, %c0_4] : memref<224x128xf32, #tpu.memory_space<vmem>>, vector<32x8xf32>
    %c192 = arith.constant 192 : index
    %c0_5 = arith.constant 0 : index
    %5 = vector.load %arg2[%c192, %c0_5] : memref<224x128xf32, #tpu.memory_space<vmem>>, vector<1x32xf32>
    %c200 = arith.constant 200 : index
    %c0_6 = arith.constant 0 : index
    %6 = vector.load %arg2[%c200, %c0_6] : memref<224x128xf32, #tpu.memory_space<vmem>>, vector<1x32xf32>
    %c208 = arith.constant 208 : index
    %c0_7 = arith.constant 0 : index
    %7 = vector.load %arg2[%c208, %c0_7] : memref<224x128xf32, #tpu.memory_space<vmem>>, vector<1x32xf32>
    %c216 = arith.constant 216 : index
    %c0_8 = arith.constant 0 : index
    %8 = vector.load %arg2[%c216, %c0_8] : memref<224x128xf32, #tpu.memory_space<vmem>>, vector<1x8xf32>
    %c0_9 = arith.constant 0 : index
    %c0_10 = arith.constant 0 : index
    %9 = vector.load %arg1[%c0_9, %c0_10] : memref<32x64xf32, #tpu.memory_space<vmem>>, vector<32x64xf32>
    %10 = arith.truncf %9 : vector<32x64xf32> to vector<32x64xbf16>
    %11 = arith.truncf %0 : vector<64x32xf32> to vector<64x32xbf16>
    %cst = arith.constant dense<0.000000e+00> : vector<32x32xf32>
    %12 = tpu.matmul %10, %11, %cst {dimension_numbers = #tpu.dot_dimension_numbers<[1], [0], [0], [1], [0, 0, 1, 1], [], []>} : vector<32x64xbf16>, vector<64x32xbf16>, vector<32x32xf32> -> vector<32x32xf32>
    %13 = vector.broadcast %5 : vector<1x32xf32> to vector<32x32xf32>
    %14 = arith.addf %12, %13 : vector<32x32xf32>
    %cst_11 = arith.constant 0.000000e+00 : f32
    %15 = vector.broadcast %cst_11 : f32 to vector<32x32xf32>
    %16 = arith.maximumf %14, %15 : vector<32x32xf32>
    %c0_12 = arith.constant 0 : index
    %c0_13 = arith.constant 0 : index
    %17 = vector.load %arg3[%c0_12, %c0_13] : memref<32x32xf32, #tpu.memory_space<vmem>>, vector<16x32xf32>
    %c0_14 = arith.constant 0 : index
    %18 = memref.load %arg0[%c0_14] : memref<2xf32, #tpu.memory_space<smem>>
    %cst_15 = arith.constant 1.000000e+00 : f32
    %19 = arith.subf %cst_15, %18 : f32
    %20 = vector.broadcast %19 : f32 to vector<16x32xf32>
    %21 = arith.mulf %17, %20 : vector<16x32xf32>
    %c16 = arith.constant 16 : index
    %c0_16 = arith.constant 0 : index
    %22 = vector.load %arg3[%c16, %c0_16] : memref<32x32xf32, #tpu.memory_space<vmem>>, vector<16x32xf32>
    %c1 = arith.constant 1 : index
    %23 = memref.load %arg0[%c1] : memref<2xf32, #tpu.memory_space<smem>>
    %cst_17 = arith.constant 1.000000e+00 : f32
    %24 = arith.subf %cst_17, %23 : f32
    %25 = vector.broadcast %24 : f32 to vector<16x32xf32>
    %26 = arith.mulf %22, %25 : vector<16x32xf32>
    %27 = tpu.concatenate %21, %26 in 0 : vector<16x32xf32>, vector<16x32xf32> -> vector<32x32xf32>
    %28 = arith.truncf %16 : vector<32x32xf32> to vector<32x32xbf16>
    %29 = arith.truncf %1 : vector<32x32xf32> to vector<32x32xbf16>
    %cst_18 = arith.constant dense<0.000000e+00> : vector<32x32xf32>
    %30 = tpu.matmul %28, %29, %cst_18 {dimension_numbers = #tpu.dot_dimension_numbers<[1], [0], [0], [1], [0, 0, 1, 1], [], []>} : vector<32x32xbf16>, vector<32x32xbf16>, vector<32x32xf32> -> vector<32x32xf32>
    %31 = vector.broadcast %6 : vector<1x32xf32> to vector<32x32xf32>
    %32 = arith.addf %30, %31 : vector<32x32xf32>
    %33 = arith.truncf %16 : vector<32x32xf32> to vector<32x32xbf16>
    %34 = arith.truncf %2 : vector<32x32xf32> to vector<32x32xbf16>
    %cst_19 = arith.constant dense<0.000000e+00> : vector<32x32xf32>
    %35 = tpu.matmul %33, %34, %cst_19 {dimension_numbers = #tpu.dot_dimension_numbers<[1], [0], [0], [1], [0, 0, 1, 1], [], []>} : vector<32x32xbf16>, vector<32x32xbf16>, vector<32x32xf32> -> vector<32x32xf32>
    %36 = arith.truncf %27 : vector<32x32xf32> to vector<32x32xbf16>
    %37 = arith.truncf %3 : vector<32x32xf32> to vector<32x32xbf16>
    %cst_20 = arith.constant dense<0.000000e+00> : vector<32x32xf32>
    %38 = tpu.matmul %36, %37, %cst_20 {dimension_numbers = #tpu.dot_dimension_numbers<[1], [0], [0], [1], [0, 0, 1, 1], [], []>} : vector<32x32xbf16>, vector<32x32xbf16>, vector<32x32xf32> -> vector<32x32xf32>
    %39 = arith.addf %35, %38 : vector<32x32xf32>
    %40 = vector.broadcast %7 : vector<1x32xf32> to vector<32x32xf32>
    %41 = arith.addf %39, %40 : vector<32x32xf32>
    %42 = math.tanh %41 : vector<32x32xf32>
    %c0_21 = arith.constant 0 : index
    %c0_22 = arith.constant 0 : index
    %43 = vector.load %arg5[%c0_21, %c0_22] : memref<32x32xf32, #tpu.memory_space<vmem>>, vector<32x32xf32>
    tpu.vector_store %arg5[%c0_21, %c0_22], %42 {strides = array<i32>} : memref<32x32xf32, #tpu.memory_space<vmem>>, vector<32x32xf32>,
    %44 = arith.addf %32, %42 : vector<32x32xf32>
    %45 = arith.truncf %44 : vector<32x32xf32> to vector<32x32xbf16>
    %46 = arith.truncf %4 : vector<32x8xf32> to vector<32x8xbf16>
    %cst_23 = arith.constant dense<0.000000e+00> : vector<32x8xf32>
    %47 = tpu.matmul %45, %46, %cst_23 {dimension_numbers = #tpu.dot_dimension_numbers<[1], [0], [0], [1], [0, 0, 1, 1], [], []>} : vector<32x32xbf16>, vector<32x8xbf16>, vector<32x8xf32> -> vector<32x8xf32>
    %48 = vector.broadcast %8 : vector<1x8xf32> to vector<32x8xf32>
    %49 = arith.addf %47, %48 : vector<32x8xf32>
    %50 = arith.negf %49 : vector<32x8xf32>
    %51 = math.exp %50 : vector<32x8xf32>
    %cst_24 = arith.constant 1.000000e+00 : f32
    %52 = vector.broadcast %cst_24 : f32 to vector<32x8xf32>
    %53 = arith.addf %52, %51 : vector<32x8xf32>
    %54 = arith.divf %52, %53 : vector<32x8xf32>
    %c0_25 = arith.constant 0 : index
    %c0_26 = arith.constant 0 : index
    %55 = vector.load %arg4[%c0_25, %c0_26] : memref<32x8xf32, #tpu.memory_space<vmem>>, vector<32x8xf32>
    tpu.vector_store %arg4[%c0_25, %c0_26], %54 {strides = array<i32>} : memref<32x8xf32, #tpu.memory_space<vmem>>, vector<32x8xf32>,
    return
  }
}

</mosaic_0001>

<llo_original>
// kernel: torch_model_postproc_forward.1
$region0: #{torch_model_postproc_forward.1}
  #allocation0 [shape = 'u32[]', space=smem, size = 0x4, offset = 0x4, fixed_abs, tag = 'smem constant byte address 0x4 - core index']
  #allocation1 [shape = 'u32[144,128]{1,0:T(1,128)}', space=vmem, size = 0x12000, scoped, tag = 'internal scratch']
  %s0 = inlined_call_operand.vmem [shape: f32[2], index: 0, kind: input, shape index: {}]
  %s1 = inlined_call_operand.vmem [shape: f32[32,64], index: 1, kind: input, shape index: {}]
  %s2 = inlined_call_operand.vmem [shape: f32[224,128], index: 2, kind: input, shape index: {}]
  %s3 = inlined_call_operand.vmem [shape: f32[32,32], index: 3, kind: input, shape index: {}, may-alias: {3,5}]
  %s4 = inlined_call_operand.vmem [shape: f32[32,8], index: 4, kind: output, shape index: {0}]
  %s5 = inlined_call_operand.vmem [shape: f32[32,32], index: 5, kind: output, shape index: {1}, may-alias: {3,5}]
  %6 = xla_tuple %s4, %s5
  %s7 = sld [smem:[#allocation0]]
  $region38: #{torch_model_postproc_forward.1} parent=0
    _
  %s9 = ssub.s32 1, %s7
  %s10 = scalar_select 0, %s9, %s7
  $region1: #{torch_model_postproc_forward.1} parent=0
    #allocation2 [shape = 'u8[512]{0}', space=smem, size = 0x200, scoped, tag = 'input window, operand 0, single buffered']
    #allocation3 [shape = 's32[1]{0}', space=sflag, size = 0x4, scoped, tag = 'scoped memory for torch_model_postproc_forward.1']
    %11 = vsyncpa [#allocation3], 0
    // Predicated region
    $region2: #{torch_model_postproc_forward.1} parent=1 // pred_check
      _
    $region3: #{torch_model_postproc_forward.1} parent=1 // pred_check_branch
      %13 = sbr.rel (0) target = $region5
    $region4: #{torch_model_postproc_forward.1} parent=1 // pred_region
      %s15 = ssub.s32 16, 16
      %16 = vsyncadd [#allocation3], %s15
      %s18 = sshll.u32 %s0, 4
      %s19 = int_to_ptr.vmem [resolvable:$true] %s18
      %21 = dma.vmem_to_smem %s19, 16, [#allocation2], [#allocation3]
    $region5: #{torch_model_postproc_forward.1} parent=1 // pred_fallthru
      _
    // Predicated region
    $region6: #{torch_model_postproc_forward.1} parent=1 // pred_check
      _
    $region7: #{torch_model_postproc_forward.1} parent=1 // pred_check_branch
      %23 = sbr.rel (0) target = $region9
    $region8: #{torch_model_postproc_forward.1} parent=1 // pred_region
      _
    $region9: #{torch_model_postproc_forward.1} parent=1 // pred_fallthru
      _
    // Predicated region
    $region10: #{torch_model_postproc_forward.1} parent=1 // pred_check
      _
    $region11: #{torch_model_postproc_forward.1} parent=1 // pred_check_branch
      %25 = sbr.rel (0) target = $region13
    $region12: #{torch_model_postproc_forward.1} parent=1 // pred_region
      _
    $region13: #{torch_model_postproc_forward.1} parent=1 // pred_fallthru
      _
    // Predicated region
    $region14: #{torch_model_postproc_forward.1} parent=1 // pred_check
      _
    $region15: #{torch_model_postproc_forward.1} parent=1 // pred_check_branch
      %27 = sbr.rel (0) target = $region17
    $region16: #{torch_model_postproc_forward.1} parent=1 // pred_region
      _
    $region17: #{torch_model_postproc_forward.1} parent=1 // pred_fallthru
      _
    // Predicated region
    $region18: #{torch_model_postproc_forward.1} parent=1 // pred_check
      _
    $region19: #{torch_model_postproc_forward.1} parent=1 // pred_check_branch
      %29 = sbr.rel (0) target = $region21
    $region20: #{torch_model_postproc_forward.1} parent=1 // pred_region
      %30 = dma.done [#allocation3], 16
    $region21: #{torch_model_postproc_forward.1} parent=1 // pred_fallthru
      _
    %31 = sfence
    %v33 = vld [vmem:[%s2] sm:$0xff]
    %v34 = vld [vmem:[%s2 + $0x8] sm:$0xff]
    %v35 = vld [vmem:[%s2 + $0x10] sm:$0xff]
    %v36 = vld [vmem:[%s2 + $0x18] sm:$0xff]
    %v37 = vld [vmem:[%s2 + $0x20] sm:$0xff]
    %v38 = vld [vmem:[%s2 + $0x28] sm:$0xff]
    %v39 = vld [vmem:[%s2 + $0x30] sm:$0xff]
    %v40 = vld [vmem:[%s2 + $0x38] sm:$0xff]
    %v41 = vld [vmem:[%s2 + $0x40] sm:$0xff]
    %v42 = vld [vmem:[%s2 + $0x48] sm:$0xff]
    %v43 = vld [vmem:[%s2 + $0x50] sm:$0xff]
    %v44 = vld [vmem:[%s2 + $0x58] sm:$0xff]
    %v45 = vld [vmem:[%s2 + $0x60] sm:$0xff]
    %v46 = vld [vmem:[%s2 + $0x68] sm:$0xff]
    %v47 = vld [vmem:[%s2 + $0x70] sm:$0xff]
    %v48 = vld [vmem:[%s2 + $0x78] sm:$0xff]
    %v49 = vld [vmem:[%s2 + $0x80] sm:$0xff]
    %v50 = vld [vmem:[%s2 + $0x88] sm:$0xff]
    %v51 = vld [vmem:[%s2 + $0x90] sm:$0xff]
    %v52 = vld [vmem:[%s2 + $0x98] sm:$0xff]
    %v53 = vld [vmem:[%s2 + $0xa0] sm:$0xff]
    %v54 = vld [vmem:[%s2 + $0xa8] sm:$0xff]
    %v55 = vld [vmem:[%s2 + $0xb0] sm:$0xff]
    %v56 = vld [vmem:[%s2 + $0xb8] sm:$0xff]
    %v57 = vld [vmem:[%s2 + $0xc0] sm:$0x1]
    %v58 = vld [vmem:[%s2 + $0xc8] sm:$0x1]
    %v59 = vld [vmem:[%s2 + $0xd0] sm:$0x1]
    %v60 = vld [vmem:[%s2 + $0xd8] sm:$0x1]
    %v61 = vld [vmem:[%s1] sm:$0xff]
    %v62 = vld [vmem:[%s1 + $0x8] sm:$0xff]
    %v63 = vld [vmem:[%s1 + $0x10] sm:$0xff]
    %v64 = vld [vmem:[%s1 + $0x18] sm:$0xff]
    %v65 = vpack.c.bf16 %v62, %v61
    %v66 = vpack.c.bf16 %v64, %v63
    %v67 = vpack.c.bf16 %v34, %v33
    %v68 = vpack.c.bf16 %v36, %v35
    %v69 = vpack.c.bf16 %v38, %v37
    %v70 = vpack.c.bf16 %v40, %v39
    %v71 = vlaneseq
    %v72 = vshrl.u32 %v71, 7
    %v73 = vsub.s32 0, %v72
    %v74 = vrot.slane %v57, %v73
    %vm75 = vcmask 523264
    %v77 = vsel %vm75, %v65, 0
    %v80 = vsel %vm75, %v66, 0
    %82 = vmatprep.subr.bf16.mxu0 0
    %83 = vmatpush1.bf16.msra.mxu0 %v67
    %84 = vmatprep.subr.bf16.mxu0 0
    %85 = vmatpush1.bf16.msra.mxu0 %v68
    %86 = vmatprep.subr.bf16.mxu0 0
    %87 = vmatpush1.bf16.msra.mxu0 %v69
    %88 = vmatprep.subr.bf16.mxu0 0
    %89 = vmatpush1.bf16.msra.mxu0 %v70
    %90 = vmatprep.subr.bf16.mxu0 0
    %91 = vmatpush1.bf16.msra.mxu0 0
    %92 = vmatprep.subr.bf16.mxu0 0
    %93 = vmatpush1.bf16.msra.mxu0 0
    %94 = vmatprep.subr.bf16.mxu0 0
    %95 = vmatpush1.bf16.msra.mxu0 0
    %96 = vmatprep.subr.bf16.mxu0 0
    %97 = vmatpush1.bf16.msra.mxu0 0
    %98 = vmatprep.subr.bf16.mxu0 0
    %99 = vmatpush1.bf16.msra.mxu0 0
    %100 = vmatprep.subr.bf16.mxu0 0
    %101 = vmatpush1.bf16.msra.mxu0 0
    %102 = vmatprep.subr.bf16.mxu0 0
    %103 = vmatpush1.bf16.msra.mxu0 0
    %104 = vmatprep.subr.bf16.mxu0 0
    %105 = vmatpush1.bf16.msra.mxu0 0
    %106 = vmatprep.subr.bf16.mxu0 0
    %107 = vmatpush1.bf16.msra.mxu0 0
    %108 = vmatprep.subr.bf16.mxu0 0
    %109 = vmatpush1.bf16.msra.mxu0 0
    %110 = vmatprep.subr.bf16.mxu0 0
    %111 = vmatpush1.bf16.msra.mxu0 0
    %112 = vmatprep.subr.bf16.mxu0 0
    %113 = vmatpush1.bf16.msra.mxu0 0
    %114 = vmatprep.mubr.bf16.mxu0 0
    %115 = vmatmul.mubr.bf16.gmra.mrb[0].mxu0 %v77
    %v116 = vpop.f32.mrb[0].mxu0
    %v117 = vadd.f32 %v74, %v116
    %v118 = vpop.f32.mrb[0].mxu0
    %v119 = vpop.f32.mrb[0].mxu0
    %v120 = vadd.f32 %v74, %v119
    %v121 = vpop.f32.mrb[0].mxu0
    %122 = vmatprep.mubr.bf16.mxu0 0
    %123 = vmatmul.mubr.bf16.gmra.mrb[0].mxu0 %v80
    %v124 = vpop.f32.mrb[0].mxu0
    %v125 = vadd.f32 %v74, %v124
    %v126 = vpop.f32.mrb[0].mxu0
    %v127 = vpop.f32.mrb[0].mxu0
    %v128 = vadd.f32 %v74, %v127
    %v129 = vpop.f32.mrb[0].mxu0
    %130 = vdwg.mxu0
    %v131 = vmax.f32 %v117, 0.0
    %v132 = vmax.f32 %v120, 0.0
    %v133 = vmax.f32 %v125, 0.0
    %v134 = vmax.f32 %v128, 0.0
    %v135 = vld [vmem:[%s3] sm:$0xff]
    %v136 = vld [vmem:[%s3 + $0x8] sm:$0xff]
    %s137 = sld [smem:[#allocation2]]
    %s138 = ssub.f32 1.0, %s137
    %v139 = vstv %s138
    %v140 = vmul.f32 %v135, %v139
    %v141 = vmul.f32 %v136, %v139
    %v142 = vld [vmem:[%s3 + $0x10] sm:$0xff]
    %v143 = vld [vmem:[%s3 + $0x18] sm:$0xff]
    %s144 = sld [smem:[#allocation2 + $0x1]]
    %s145 = ssub.f32 1.0, %s144
    %v146 = vstv %s145
    %v147 = vmul.f32 %v142, %v146
    %v148 = vmul.f32 %v143, %v146
    %v149 = vpack.c.bf16 %v132, %v131
    %v150 = vpack.c.bf16 %v134, %v133
    %v151 = vpack.c.bf16 %v42, %v41
    %v152 = vpack.c.bf16 %v44, %v43
    %v153 = vlaneseq
    %v154 = vshrl.u32 %v153, 7
    %v155 = vsub.s32 0, %v154
    %v156 = vrot.slane %v58, %v155
    %vm157 = vcmask 261120
    %v159 = vsel %vm157, %v149, 0
    %v162 = vsel %vm157, %v150, 0
    %164 = vmatprep.subr.bf16.mxu0 0
    %165 = vmatpush1.bf16.msra.mxu0 %v151
    %166 = vmatprep.subr.bf16.mxu0 0
    %167 = vmatpush1.bf16.msra.mxu0 %v152
    %168 = vmatprep.subr.bf16.mxu0 0
    %169 = vmatpush1.bf16.msra.mxu0 0
    %170 = vmatprep.subr.bf16.mxu0 0
    %171 = vmatpush1.bf16.msra.mxu0 0
    %172 = vmatprep.subr.bf16.mxu0 0
    %173 = vmatpush1.bf16.msra.mxu0 0
    %174 = vmatprep.subr.bf16.mxu0 0
    %175 = vmatpush1.bf16.msra.mxu0 0
    %176 = vmatprep.subr.bf16.mxu0 0
    %177 = vmatpush1.bf16.msra.mxu0 0
    %178 = vmatprep.subr.bf16.mxu0 0
    %179 = vmatpush1.bf16.msra.mxu0 0
    %180 = vmatprep.subr.bf16.mxu0 0
    %181 = vmatpush1.bf16.msra.mxu0 0
    %182 = vmatprep.subr.bf16.mxu0 0
    %183 = vmatpush1.bf16.msra.mxu0 0
    %184 = vmatprep.subr.bf16.mxu0 0
    %185 = vmatpush1.bf16.msra.mxu0 0
    %186 = vmatprep.subr.bf16.mxu0 0
    %187 = vmatpush1.bf16.msra.mxu0 0
    %188 = vmatprep.subr.bf16.mxu0 0
    %189 = vmatpush1.bf16.msra.mxu0 0
    %190 = vmatprep.subr.bf16.mxu0 0
    %191 = vmatpush1.bf16.msra.mxu0 0
    %192 = vmatprep.subr.bf16.mxu0 0
    %193 = vmatpush1.bf16.msra.mxu0 0
    %194 = vmatprep.subr.bf16.mxu0 0
    %195 = vmatpush1.bf16.msra.mxu0 0
    %196 = vmatprep.mubr.bf16.mxu0 0
    %197 = vmatmul.mubr.bf16.gmra.mrb[0].mxu0 %v159
    %v198 = vpop.f32.mrb[0].mxu0
    %v199 = vadd.f32 %v156, %v198
    %v200 = vpop.f32.mrb[0].mxu0
    %v201 = vpop.f32.mrb[0].mxu0
    %v202 = vadd.f32 %v156, %v201
    %v203 = vpop.f32.mrb[0].mxu0
    %204 = vmatprep.mubr.bf16.mxu0 0
    %205 = vmatmul.mubr.bf16.gmra.mrb[0].mxu0 %v162
    %v206 = vpop.f32.mrb[0].mxu0
    %v207 = vadd.f32 %v156, %v206
    %v208 = vpop.f32.mrb[0].mxu0
    %v209 = vpop.f32.mrb[0].mxu0
    %v210 = vadd.f32 %v156, %v209
    %v211 = vpop.f32.mrb[0].mxu0
    %212 = vdwg.mxu0
    %v213 = vpack.c.bf16 %v46, %v45
    %v214 = vpack.c.bf16 %v48, %v47
    %v215 = vpack.c.bf16 %v141, %v140
    %v216 = vpack.c.bf16 %v148, %v147
    %v217 = vpack.c.bf16 %v50, %v49
    %v218 = vpack.c.bf16 %v52, %v51
    %v220 = vsel %vm157, %v215, 0
    %v223 = vsel %vm157, %v216, 0
    %225 = vmatprep.subr.bf16.mxu0 0
    %226 = vmatpush1.bf16.msra.mxu0 %v217
    %227 = vmatprep.subr.bf16.mxu0 0
    %228 = vmatpush1.bf16.msra.mxu0 %v218
    %229 = vmatprep.subr.bf16.mxu0 0
    %230 = vmatpush1.bf16.msra.mxu0 0
    %231 = vmatprep.subr.bf16.mxu0 0
    %232 = vmatpush1.bf16.msra.mxu0 0
    %233 = vmatprep.subr.bf16.mxu0 0
    %234 = vmatpush1.bf16.msra.mxu0 0
    %235 = vmatprep.subr.bf16.mxu0 0
    %236 = vmatpush1.bf16.msra.mxu0 0
    %237 = vmatprep.subr.bf16.mxu0 0
    %238 = vmatpush1.bf16.msra.mxu0 0
    %239 = vmatprep.subr.bf16.mxu0 0
    %240 = vmatpush1.bf16.msra.mxu0 0
    %241 = vmatprep.subr.bf16.mxu0 0
    %242 = vmatpush1.bf16.msra.mxu0 0
    %243 = vmatprep.subr.bf16.mxu0 0
    %244 = vmatpush1.bf16.msra.mxu0 0
    %245 = vmatprep.subr.bf16.mxu0 0
    %246 = vmatpush1.bf16.msra.mxu0 0
    %247 = vmatprep.subr.bf16.mxu0 0
    %248 = vmatpush1.bf16.msra.mxu0 0
    %249 = vmatprep.subr.bf16.mxu0 0
    %250 = vmatpush1.bf16.msra.mxu0 0
    %251 = vmatprep.subr.bf16.mxu0 0
    %252 = vmatpush1.bf16.msra.mxu0 0
    %253 = vmatprep.subr.bf16.mxu0 0
    %254 = vmatpush1.bf16.msra.mxu0 0
    %255 = vmatprep.subr.bf16.mxu0 0
    %256 = vmatpush1.bf16.msra.mxu0 0
    %257 = vmatprep.mubr.bf16.mxu0 0
    %258 = vmatmul.mubr.bf16.gmra.mrb[0].mxu0 %v220
    %v259 = vpop.f32.mrb[0].mxu0
    %v260 = vadd.f32 0.0, %v259
    %v261 = vpop.f32.mrb[0].mxu0
    %v262 = vpop.f32.mrb[0].mxu0
    %v263 = vadd.f32 0.0, %v262
    %v264 = vpop.f32.mrb[0].mxu0
    %265 = vmatprep.mubr.bf16.mxu0 0
    %266 = vmatmul.mubr.bf16.gmra.mrb[0].mxu0 %v223
    %v267 = vpop.f32.mrb[0].mxu0
    %v268 = vadd.f32 0.0, %v267
    %v269 = vpop.f32.mrb[0].mxu0
    %v270 = vpop.f32.mrb[0].mxu0
    %v271 = vadd.f32 0.0, %v270
    %v272 = vpop.f32.mrb[0].mxu0
    %273 = vdwg.mxu0
    %274 = vmatprep.subr.bf16.mxu0 0
    %275 = vmatpush1.bf16.msra.mxu0 %v213
    %276 = vmatprep.subr.bf16.mxu0 0
    %277 = vmatpush1.bf16.msra.mxu0 %v214
    %278 = vmatprep.subr.bf16.mxu0 0
    %279 = vmatpush1.bf16.msra.mxu0 0
    %280 = vmatprep.subr.bf16.mxu0 0
    %281 = vmatpush1.bf16.msra.mxu0 0
    %282 = vmatprep.subr.bf16.mxu0 0
    %283 = vmatpush1.bf16.msra.mxu0 0
    %284 = vmatprep.subr.bf16.mxu0 0
    %285 = vmatpush1.bf16.msra.mxu0 0
    %286 = vmatprep.subr.bf16.mxu0 0
    %287 = vmatpush1.bf16.msra.mxu0 0
    %288 = vmatprep.subr.bf16.mxu0 0
    %289 = vmatpush1.bf16.msra.mxu0 0
    %290 = vmatprep.subr.bf16.mxu0 0
    %291 = vmatpush1.bf16.msra.mxu0 0
    %292 = vmatprep.subr.bf16.mxu0 0
    %293 = vmatpush1.bf16.msra.mxu0 0
    %294 = vmatprep.subr.bf16.mxu0 0
    %295 = vmatpush1.bf16.msra.mxu0 0
    %296 = vmatprep.subr.bf16.mxu0 0
    %297 = vmatpush1.bf16.msra.mxu0 0
    %298 = vmatprep.subr.bf16.mxu0 0
    %299 = vmatpush1.bf16.msra.mxu0 0
    %300 = vmatprep.subr.bf16.mxu0 0
    %301 = vmatpush1.bf16.msra.mxu0 0
    %302 = vmatprep.subr.bf16.mxu0 0
    %303 = vmatpush1.bf16.msra.mxu0 0
    %304 = vmatprep.subr.bf16.mxu0 0
    %305 = vmatpush1.bf16.msra.mxu0 0
    %306 = vmatprep.mubr.bf16.mxu0 0
    %307 = vmatmul.mubr.bf16.gmra.mrb[0].mxu0 %v159
    %v308 = vpop.f32.mrb[0].mxu0
    %v309 = vadd.f32 %v260, %v308
    %v310 = vpop.f32.mrb[0].mxu0
    %v311 = vpop.f32.mrb[0].mxu0
    %v312 = vadd.f32 %v263, %v311
    %v313 = vpop.f32.mrb[0].mxu0
    %314 = vmatprep.mubr.bf16.mxu0 0
    %315 = vmatmul.mubr.bf16.gmra.mrb[0].mxu0 %v162
    %v316 = vpop.f32.mrb[0].mxu0
    %v317 = vadd.f32 %v268, %v316
    %v318 = vpop.f32.mrb[0].mxu0
    %v319 = vpop.f32.mrb[0].mxu0
    %v320 = vadd.f32 %v271, %v319
    %v321 = vpop.f32.mrb[0].mxu0
    %322 = vdwg.mxu0
    %v323 = vlaneseq
    %v324 = vshrl.u32 %v323, 7
    %v325 = vsub.s32 0, %v324
    %v326 = vrot.slane %v59, %v325
    %v327 = vadd.f32 %v309, %v326
    %v328 = vadd.f32 %v312, %v326
    %v329 = vadd.f32 %v317, %v326
    %v330 = vadd.f32 %v320, %v326
    %v331 = vtanh.pop %v327
    %v332 = vtanh.pop %v328
    %v333 = vtanh.pop %v329
    %v334 = vtanh.pop %v330
    %335 = vst.msk [vmem:[%s5] sm:$0xff] %vm157, %v331
    %336 = vst.msk [vmem:[%s5 + $0x8] sm:$0xff] %vm157, %v332
    %337 = vst.msk [vmem:[%s5 + $0x10] sm:$0xff] %vm157, %v333
    %338 = vst.msk [vmem:[%s5 + $0x18] sm:$0xff] %vm157, %v334
    %v339 = vadd.f32 %v199, %v331
    %v340 = vadd.f32 %v202, %v332
    %v341 = vadd.f32 %v207, %v333
    %v342 = vadd.f32 %v210, %v334
    %v343 = vpack.c.bf16 %v340, %v339
    %v344 = vpack.c.bf16 %v342, %v341
    %v345 = vpack.c.bf16 %v54, %v53
    %v346 = vpack.c.bf16 %v56, %v55
    %v347 = vlaneseq
    %v348 = vshrl.u32 %v347, 7
    %v349 = vsub.s32 0, %v348
    %v350 = vrot.slane %v60, %v349
    %v352 = vsel %vm157, %v343, 0
    %v355 = vsel %vm157, %v344, 0
    %357 = vmatprep.subr.bf16.mxu0 0
    %358 = vmatpush1.bf16.msra.mxu0 %v345
    %359 = vmatprep.subr.bf16.mxu0 0
    %360 = vmatpush1.bf16.msra.mxu0 %v346
    %361 = vmatprep.subr.bf16.mxu0 0
    %362 = vmatpush1.bf16.msra.mxu0 0
    %363 = vmatprep.subr.bf16.mxu0 0
    %364 = vmatpush1.bf16.msra.mxu0 0
    %365 = vmatprep.subr.bf16.mxu0 0
    %366 = vmatpush1.bf16.msra.mxu0 0
    %367 = vmatprep.subr.bf16.mxu0 0
    %368 = vmatpush1.bf16.msra.mxu0 0
    %369 = vmatprep.subr.bf16.mxu0 0
    %370 = vmatpush1.bf16.msra.mxu0 0
    %371 = vmatprep.subr.bf16.mxu0 0
    %372 = vmatpush1.bf16.msra.mxu0 0
    %373 = vmatprep.subr.bf16.mxu0 0
    %374 = vmatpush1.bf16.msra.mxu0 0
    %375 = vmatprep.subr.bf16.mxu0 0
    %376 = vmatpush1.bf16.msra.mxu0 0
    %377 = vmatprep.subr.bf16.mxu0 0
    %378 = vmatpush1.bf16.msra.mxu0 0
    %379 = vmatprep.subr.bf16.mxu0 0
    %380 = vmatpush1.bf16.msra.mxu0 0
    %381 = vmatprep.subr.bf16.mxu0 0
    %382 = vmatpush1.bf16.msra.mxu0 0
    %383 = vmatprep.subr.bf16.mxu0 0
    %384 = vmatpush1.bf16.msra.mxu0 0
    %385 = vmatprep.subr.bf16.mxu0 0
    %386 = vmatpush1.bf16.msra.mxu0 0
    %387 = vmatprep.subr.bf16.mxu0 0
    %388 = vmatpush1.bf16.msra.mxu0 0
    %389 = vmatprep.mubr.bf16.mxu0 0
    %390 = vmatmul.mubr.bf16.gmra.mrb[0].mxu0 %v352
    %v391 = vpop.f32.mrb[0].mxu0
    %v392 = vadd.f32 %v350, %v391
    %v393 = vpop.f32.mrb[0].mxu0
    %v394 = vpop.f32.mrb[0].mxu0
    %v395 = vadd.f32 %v350, %v394
    %v396 = vpop.f32.mrb[0].mxu0
    %397 = vmatprep.mubr.bf16.mxu0 0
    %398 = vmatmul.mubr.bf16.gmra.mrb[0].mxu0 %v355
    %v399 = vpop.f32.mrb[0].mxu0
    %v400 = vadd.f32 %v350, %v399
    %v401 = vpop.f32.mrb[0].mxu0
    %v402 = vpop.f32.mrb[0].mxu0
    %v403 = vadd.f32 %v350, %v402
    %v404 = vpop.f32.mrb[0].mxu0
    %405 = vdwg.mxu0
    %v406 = vxor.u32 %v392, 2147483648
    %v407 = vxor.u32 %v395, 2147483648
    %v408 = vxor.u32 %v400, 2147483648
    %v409 = vxor.u32 %v403, 2147483648
    %v410 = vmul.f32 %v406, 1.442695
    %v411 = vpow.pop %v410
    %v412 = vmul.f32 %v407, 1.442695
    %v413 = vpow.pop %v412
    %v414 = vmul.f32 %v408, 1.442695
    %v415 = vpow.pop %v414
    %v416 = vmul.f32 %v409, 1.442695
    %v417 = vpow.pop %v416
    %v418 = vadd.f32 %v411, 1.0
    %v419 = vadd.f32 %v413, 1.0
    %v420 = vadd.f32 %v415, 1.0
    %v421 = vadd.f32 %v417, 1.0
    %v422 = vrcp.pop %v418
    %v423 = vmul.f32 1.0, %v422
    %v424 = vrcp.pop %v419
    %v425 = vmul.f32 1.0, %v424
    %v426 = vrcp.pop %v420
    %v427 = vmul.f32 1.0, %v426
    %v428 = vrcp.pop %v421
    %v429 = vmul.f32 1.0, %v428
    %vm430 = vcmask 64512
    %431 = vst.msk [vmem:[%s4] sm:$0xff] %vm430, %v423
    %432 = vst.msk [vmem:[%s4 + $0x8] sm:$0xff] %vm430, %v425
    %433 = vst.msk [vmem:[%s4 + $0x10] sm:$0xff] %vm430, %v427
    %434 = vst.msk [vmem:[%s4 + $0x18] sm:$0xff] %vm430, %v429
    // Predicated region
    $region22: #{torch_model_postproc_forward.1} parent=1 // pred_check
      _
    $region23: #{torch_model_postproc_forward.1} parent=1 // pred_check_branch
      %436 = sbr.rel (0) target = $region25
    $region24: #{torch_model_postproc_forward.1} parent=1 // pred_region
      _
    $region25: #{torch_model_postproc_forward.1} parent=1 // pred_fallthru
      _
    // Predicated region
    $region26: #{torch_model_postproc_forward.1} parent=1 // pred_check
      _
    $region27: #{torch_model_postproc_forward.1} parent=1 // pred_check_branch
      %438 = sbr.rel (0) target = $region29
    $region28: #{torch_model_postproc_forward.1} parent=1 // pred_region
      _
    $region29: #{torch_model_postproc_forward.1} parent=1 // pred_fallthru
      _
    // Predicated region
    $region30: #{torch_model_postproc_forward.1} parent=1 // pred_check
      _
    $region31: #{torch_model_postproc_forward.1} parent=1 // pred_check_branch
      %440 = sbr.rel (0) target = $region33
    $region32: #{torch_model_postproc_forward.1} parent=1 // pred_region
      _
    $region33: #{torch_model_postproc_forward.1} parent=1 // pred_fallthru
      _
    // Predicated region
    $region34: #{torch_model_postproc_forward.1} parent=1 // pred_check
      _
    $region35: #{torch_model_postproc_forward.1} parent=1 // pred_check_branch
      %442 = sbr.rel (0) target = $region37
    $region36: #{torch_model_postproc_forward.1} parent=1 // pred_region
      _
    $region37: #{torch_model_postproc_forward.1} parent=1 // pred_fallthru
      _
    %443 = vsyncpa [#allocation3], 1

</llo_original>
